<compile_context>
chip_gen: v7x
topology: tpu7x:2x2x1
jax: 0.10.0
libtpu: 0.0.40
codegen_flags: <defaults>
</compile_context>

<pallas_src>
import jax
import jax.numpy as jnp
from jax.experimental import pallas as pl
from jax.experimental.pallas import tpu as pltpu

IN_DIM = 200     # l1 input features
HIDDEN = 256     # l1/l2/l3 output features


def dense_mlp_kernel(x_ref, w1_ref, b1_ref, w2_ref, b2_ref, w3_ref, b3_ref, o_ref):
    # x_ref: (TB, 200) f32. Weights bf16 ([in, out] layout), biases (1, 256) f32.
    x = x_ref[...].astype(jnp.bfloat16)   # bf16 operands, f32 accumulation (MXU native)

    h1 = jnp.dot(x, w1_ref[...], preferred_element_type=jnp.float32) + b1_ref[...]
    h1 = jnp.maximum(h1, 0.0).astype(jnp.bfloat16)

    h2 = jnp.dot(h1, w2_ref[...], preferred_element_type=jnp.float32) + b2_ref[...]
    h2 = jnp.maximum(h2, 0.0).astype(jnp.bfloat16)

    # l3: raw output, no activation (matches PyTorch forward).
    h3 = jnp.dot(h2, w3_ref[...], preferred_element_type=jnp.float32) + b3_ref[...]

    o_ref[...] = h3.astype(o_ref.dtype)


def _cdiv(a, b):
    return -(-a // b)


def _round_up(n, m):
    return _cdiv(n, m) * m


def _select_batch_tile(B, tb_max):
    """Balanced batch tile: big (amortize ~0.35us/step), multiple of 8, and an
    even number (>=2) of grid steps for large B so both v7x TCs get work."""
    steps = max(_cdiv(B, tb_max), 1)
    if B >= 512:
        steps = max(steps, 2)
        steps = _round_up(steps, 2)
    return _round_up(_cdiv(B, steps), 8)


def densenet_forward(x, prepared_params, tb=2048, out_dtype=jnp.bfloat16):
    """x: [B, 200] float32 -> [B, 256] (output of l3, no activation)."""
    w1, b1, w2, b2, w3, b3 = prepared_params
    B = x.shape[0]

    TB = _select_batch_tile(B, tb)
    grid = (_cdiv(B, TB),)

    def row_spec(shape):      # tiled along batch; last block may hang over B
        return pl.BlockSpec(shape, lambda i: (i, 0))

    def pinned_spec(shape):   # constant index_map -> fetched once, VMEM-resident
        return pl.BlockSpec(shape, lambda i: (0, 0))

    return pl.pallas_call(
        dense_mlp_kernel,
        out_shape=jax.ShapeDtypeStruct((B, HIDDEN), out_dtype),
        grid=grid,
        in_specs=[
            row_spec((TB, IN_DIM)),            # x tile, un-padded K=200 (== full dim)
            pinned_spec((IN_DIM, HIDDEN)),     # W1 (200, 256)
            pinned_spec((1, HIDDEN)),          # b1
            pinned_spec((HIDDEN, HIDDEN)),     # W2
            pinned_spec((1, HIDDEN)),          # b2
            pinned_spec((HIDDEN, HIDDEN)),     # W3
            pinned_spec((1, HIDDEN)),          # b3
        ],
        out_specs=row_spec((TB, HIDDEN)),
        compiler_params=pltpu.CompilerParams(
            dimension_semantics=("parallel",),     # megacore batch sharding on v7x
            vmem_limit_bytes=48 * 1024 * 1024,     # headroom for TB=2048 (< v7x 64 MiB)
        ),
    )(x, w1, b1, w2, b2, w3, b3)


def init_params(key):
    """nn.Linear-style init (uniform +/- 1/sqrt(fan_in)), PyTorch [out, in] layout."""
    ks = jax.random.split(key, 6)

    def linear(kw, kb, fan_in, fan_out):
        bound = 1.0 / float(fan_in) ** 0.5
        w = jax.random.uniform(kw, (fan_out, fan_in), jnp.float32, -bound, bound)
        b = jax.random.uniform(kb, (fan_out,), jnp.float32, -bound, bound)
        return w, b

    w1, b1 = linear(ks[0], ks[1], IN_DIM, HIDDEN)
    w2, b2 = linear(ks[2], ks[3], HIDDEN, HIDDEN)
    w3, b3 = linear(ks[4], ks[5], HIDDEN, HIDDEN)
    return (w1, b1, w2, b2, w3, b3)


def prepare_params(params):
    """One-time host-side prep: transpose to [in, out], cast weights to bf16
    (f32 accumulation happens in-kernel), biases to (1, 256) f32."""
    w1, b1, w2, b2, w3, b3 = params
    return (
        w1.T.astype(jnp.bfloat16), b1.reshape(1, HIDDEN).astype(jnp.float32),
        w2.T.astype(jnp.bfloat16), b2.reshape(1, HIDDEN).astype(jnp.float32),
        w3.T.astype(jnp.bfloat16), b3.reshape(1, HIDDEN).astype(jnp.float32),
    )


def reference_forward(x, params):
    """Pure-JAX f32 reference with PyTorch-layout params (eval-mode dropout = identity)."""
    w1, b1, w2, b2, w3, b3 = params
    h = jnp.maximum(x @ w1.T + b1, 0.0)
    h = jnp.maximum(h @ w2.T + b2, 0.0)
    return h @ w3.T + b3


if __name__ == "__main__":
    key = jax.random.PRNGKey(0)
    k_x, k_x2, k_p = jax.random.split(key, 3)

    params = init_params(k_p)
    prepped = prepare_params(params)

    # Small primary test (single grid step, TB == B == 8).
    B = 8
    x = jax.random.normal(k_x, (B, IN_DIM), dtype=jnp.float32)
    out = jax.block_until_ready(densenet_forward(x, prepped))
    ref = reference_forward(x, params)
    assert out.shape == (B, HIDDEN)
    assert jnp.allclose(out.astype(jnp.float32), ref, atol=5e-2, rtol=5e-2), \
        "mismatch vs. reference (B=8)"

    # Multi-step grid with a ragged last block (B=300, forced small tile):
    # exercises pinned weights across steps and OOB output-row clipping.
    B2 = 300
    x2 = jax.random.normal(k_x2, (B2, IN_DIM), dtype=jnp.float32)
    out2 = jax.block_until_ready(densenet_forward(x2, prepped, tb=128))
    ref2 = reference_forward(x2, params)
    assert out2.shape == (B2, HIDDEN)
    assert jnp.allclose(out2.astype(jnp.float32), ref2, atol=5e-2, rtol=5e-2), \
        "mismatch vs. reference (B=300)"

    print("KERNEL_OK")
</pallas_src>

<mosaic_0001>
module attributes {stable_mosaic.version = 11 : i64} {
  func.func @dense_mlp_kernel(%arg0: i32, %arg1: memref<8x200xf32, #tpu.memory_space<vmem>>, %arg2: memref<200x256xbf16, #tpu.memory_space<vmem>>, %arg3: memref<1x256xf32, #tpu.memory_space<vmem>>, %arg4: memref<256x256xbf16, #tpu.memory_space<vmem>>, %arg5: memref<1x256xf32, #tpu.memory_space<vmem>>, %arg6: memref<256x256xbf16, #tpu.memory_space<vmem>>, %arg7: memref<1x256xf32, #tpu.memory_space<vmem>>, %arg8: memref<8x256xbf16, #tpu.memory_space<vmem>>) attributes {dimension_semantics = [#tpu.dimension_semantics<parallel>], iteration_bounds = array<i64: 1>, scalar_prefetch = 0 : i64, scratch_operands = 0 : i64, tpu.core_type = #tpu.core_type<tc>, window_params = [{transform_indices = @transform_0, window_bounds = array<i64: 8, 200>}, {pipeline_mode = #tpu.pipeline_mode<synchronous>, transform_indices = @transform_1, window_bounds = array<i64: 200, 256>}, {pipeline_mode = #tpu.pipeline_mode<synchronous>, transform_indices = @transform_2, window_bounds = array<i64: 1, 256>}, {pipeline_mode = #tpu.pipeline_mode<synchronous>, transform_indices = @transform_3, window_bounds = array<i64: 256, 256>}, {pipeline_mode = #tpu.pipeline_mode<synchronous>, transform_indices = @transform_4, window_bounds = array<i64: 1, 256>}, {pipeline_mode = #tpu.pipeline_mode<synchronous>, transform_indices = @transform_5, window_bounds = array<i64: 256, 256>}, {pipeline_mode = #tpu.pipeline_mode<synchronous>, transform_indices = @transform_6, window_bounds = array<i64: 1, 256>}, {transform_indices = @transform_7, window_bounds = array<i64: 8, 256>}]} {
    %c0 = arith.constant 0 : index
    %c0_0 = arith.constant 0 : index
    %0 = vector.load %arg1[%c0, %c0_0] : memref<8x200xf32, #tpu.memory_space<vmem>>, vector<8x200xf32>
    %1 = arith.truncf %0 : vector<8x200xf32> to vector<8x200xbf16>
    %c0_1 = arith.constant 0 : index
    %c0_2 = arith.constant 0 : index
    %2 = vector.load %arg2[%c0_1, %c0_2] : memref<200x256xbf16, #tpu.memory_space<vmem>>, vector<200x256xbf16>
    %cst = arith.constant dense<0.000000e+00> : vector<8x256xf32>
    %3 = tpu.matmul %1, %2, %cst {dimension_numbers = #tpu.dot_dimension_numbers<[1], [0], [0], [1], [0, 0, 1, 1], [], []>} : vector<8x200xbf16>, vector<200x256xbf16>, vector<8x256xf32> -> vector<8x256xf32>
    %c0_3 = arith.constant 0 : index
    %c0_4 = arith.constant 0 : index
    %4 = vector.load %arg3[%c0_3, %c0_4] : memref<1x256xf32, #tpu.memory_space<vmem>>, vector<1x256xf32>
    %5 = vector.broadcast %4 : vector<1x256xf32> to vector<8x256xf32>
    %6 = arith.addf %3, %5 : vector<8x256xf32>
    %cst_5 = arith.constant 0.000000e+00 : f32
    %7 = vector.broadcast %cst_5 : f32 to vector<8x256xf32>
    %8 = arith.maximumf %6, %7 : vector<8x256xf32>
    %9 = arith.truncf %8 : vector<8x256xf32> to vector<8x256xbf16>
    %c0_6 = arith.constant 0 : index
    %c0_7 = arith.constant 0 : index
    %10 = vector.load %arg4[%c0_6, %c0_7] : memref<256x256xbf16, #tpu.memory_space<vmem>>, vector<256x256xbf16>
    %cst_8 = arith.constant dense<0.000000e+00> : vector<8x256xf32>
    %11 = tpu.matmul %9, %10, %cst_8 {dimension_numbers = #tpu.dot_dimension_numbers<[1], [0], [0], [1], [0, 0, 1, 1], [], []>} : vector<8x256xbf16>, vector<256x256xbf16>, vector<8x256xf32> -> vector<8x256xf32>
    %c0_9 = arith.constant 0 : index
    %c0_10 = arith.constant 0 : index
    %12 = vector.load %arg5[%c0_9, %c0_10] : memref<1x256xf32, #tpu.memory_space<vmem>>, vector<1x256xf32>
    %13 = vector.broadcast %12 : vector<1x256xf32> to vector<8x256xf32>
    %14 = arith.addf %11, %13 : vector<8x256xf32>
    %cst_11 = arith.constant 0.000000e+00 : f32
    %15 = vector.broadcast %cst_11 : f32 to vector<8x256xf32>
    %16 = arith.maximumf %14, %15 : vector<8x256xf32>
    %17 = arith.truncf %16 : vector<8x256xf32> to vector<8x256xbf16>
    %c0_12 = arith.constant 0 : index
    %c0_13 = arith.constant 0 : index
    %18 = vector.load %arg6[%c0_12, %c0_13] : memref<256x256xbf16, #tpu.memory_space<vmem>>, vector<256x256xbf16>
    %cst_14 = arith.constant dense<0.000000e+00> : vector<8x256xf32>
    %19 = tpu.matmul %17, %18, %cst_14 {dimension_numbers = #tpu.dot_dimension_numbers<[1], [0], [0], [1], [0, 0, 1, 1], [], []>} : vector<8x256xbf16>, vector<256x256xbf16>, vector<8x256xf32> -> vector<8x256xf32>
    %c0_15 = arith.constant 0 : index
    %c0_16 = arith.constant 0 : index
    %20 = vector.load %arg7[%c0_15, %c0_16] : memref<1x256xf32, #tpu.memory_space<vmem>>, vector<1x256xf32>
    %21 = vector.broadcast %20 : vector<1x256xf32> to vector<8x256xf32>
    %22 = arith.addf %19, %21 : vector<8x256xf32>
    %23 = arith.truncf %22 : vector<8x256xf32> to vector<8x256xbf16>
    %c0_17 = arith.constant 0 : index
    %c0_18 = arith.constant 0 : index
    %24 = vector.load %arg8[%c0_17, %c0_18] : memref<8x256xbf16, #tpu.memory_space<vmem>>, vector<8x256xbf16>
    tpu.vector_store %arg8[%c0_17, %c0_18], %23 {strides = array<i32>} : memref<8x256xbf16, #tpu.memory_space<vmem>>, vector<8x256xbf16>,
    return
  }
  func.func @transform_0(%arg0: i32) -> (i32, i32) {
    %c0_i32 = arith.constant 0 : i32
    %c0_i32_0 = arith.constant 0 : i32
    return %arg0, %c0_i32 : i32, i32
  }
  func.func @transform_1(%arg0: i32) -> (i32, i32) {
    %c0_i32 = arith.constant 0 : i32
    %c0_i32_0 = arith.constant 0 : i32
    %c0_i32_1 = arith.constant 0 : i32
    return %c0_i32, %c0_i32_0 : i32, i32
  }
  func.func @transform_2(%arg0: i32) -> (i32, i32) {
    %c0_i32 = arith.constant 0 : i32
    %c0_i32_0 = arith.constant 0 : i32
    %c0_i32_1 = arith.constant 0 : i32
    return %c0_i32, %c0_i32_0 : i32, i32
  }
  func.func @transform_3(%arg0: i32) -> (i32, i32) {
    %c0_i32 = arith.constant 0 : i32
    %c0_i32_0 = arith.constant 0 : i32
    %c0_i32_1 = arith.constant 0 : i32
    return %c0_i32, %c0_i32_0 : i32, i32
  }
  func.func @transform_4(%arg0: i32) -> (i32, i32) {
    %c0_i32 = arith.constant 0 : i32
    %c0_i32_0 = arith.constant 0 : i32
    %c0_i32_1 = arith.constant 0 : i32
    return %c0_i32, %c0_i32_0 : i32, i32
  }
  func.func @transform_5(%arg0: i32) -> (i32, i32) {
    %c0_i32 = arith.constant 0 : i32
    %c0_i32_0 = arith.constant 0 : i32
    %c0_i32_1 = arith.constant 0 : i32
    return %c0_i32, %c0_i32_0 : i32, i32
  }
  func.func @transform_6(%arg0: i32) -> (i32, i32) {
    %c0_i32 = arith.constant 0 : i32
    %c0_i32_0 = arith.constant 0 : i32
    %c0_i32_1 = arith.constant 0 : i32
    return %c0_i32, %c0_i32_0 : i32, i32
  }
  func.func @transform_7(%arg0: i32) -> (i32, i32) {
    %c0_i32 = arith.constant 0 : i32
    %c0_i32_0 = arith.constant 0 : i32
    return %arg0, %c0_i32 : i32, i32
  }
}

</mosaic_0001>

<llo_original>
// kernel: tpu_custom_call.1
$region0: #{tpu_custom_call.1}
  #allocation0 [shape = 'u32[]', space=smem, size = 0x4, offset = 0x4, fixed_abs, tag = 'smem constant byte address 0x4 - core index']
  #allocation1 [shape = 'u32[144,128]{1,0:T(1,128)}', space=vmem, size = 0x12000, scoped, tag = 'internal scratch']
  %s0 = inlined_call_operand.hbm [shape: f32[8,200], index: 0, kind: input, shape index: {}]
  %s1 = inlined_call_operand.hbm [shape: bf16[200,256], index: 1, kind: input, shape index: {}]
  %s2 = inlined_call_operand.vmem [shape: f32[1,256], index: 2, kind: input, shape index: {}]
  %s3 = inlined_call_operand.hbm [shape: bf16[256,256], index: 3, kind: input, shape index: {}]
  %s4 = inlined_call_operand.vmem [shape: f32[1,256], index: 4, kind: input, shape index: {}]
  %s5 = inlined_call_operand.hbm [shape: bf16[256,256], index: 5, kind: input, shape index: {}]
  %s6 = inlined_call_operand.vmem [shape: f32[1,256], index: 6, kind: input, shape index: {}]
  %s7 = inlined_call_operand.hbm [shape: bf16[8,256], index: 7, kind: output, shape index: {}]
  %s8 = sld [smem:[#allocation0]]
  $region54: #{tpu_custom_call.1} parent=0
    _
  %s10 = ssub.s32 1, %s8
  %s11 = scalar_select 0, %s10, %s8
  $region1: #{tpu_custom_call.1} parent=0
    #allocation2 [shape = 'u8[8192]{0}', space=vmem, size = 0x2000, scoped, tag = 'input window, operand 0, single buffered']
    #allocation3 [shape = 's32[1]{0}', space=sflag, size = 0x4, scoped, tag = 'scoped memory for tpu_custom_call.1']
    #allocation4 [shape = 's32[1]{0}', space=sflag, size = 0x4, scoped, tag = 'scoped memory for tpu_custom_call.1']
    #allocation5 [shape = 'u8[102400]{0}', space=vmem, size = 0x19000, scoped, tag = 'input window, operand 1, single buffered']
    #allocation6 [shape = 's32[1]{0}', space=sflag, size = 0x4, scoped, tag = 'scoped memory for tpu_custom_call.1']
    #allocation7 [shape = 'u8[131072]{0}', space=vmem, size = 0x20000, scoped, tag = 'input window, operand 3, single buffered']
    #allocation8 [shape = 'u8[131072]{0}', space=vmem, size = 0x20000, scoped, tag = 'input window, operand 5, single buffered']
    #allocation9 [shape = 's32[1]{0}', space=sflag, size = 0x4, scoped, tag = 'scoped memory for tpu_custom_call.1']
    #allocation10 [shape = 'u8[4096]{0}', space=vmem, size = 0x1000, scoped, tag = 'output window, operand 0, single buffered']
    %12 = vsyncpa [#allocation3], 0
    %13 = vsyncpa [#allocation6], 0
    %14 = vsyncpa [#allocation9], 0
    %15 = vsyncpa [#allocation4], 0
    // Predicated region
    $region2: #{tpu_custom_call.1} parent=1 // pred_check
      _
    $region3: #{tpu_custom_call.1} parent=1 // pred_check_branch
      %17 = sbr.rel (0) target = $region5
    $region4: #{tpu_custom_call.1} parent=1 // pred_region
      %s19 = ssub.s32 256, 256
      %20 = vsyncadd [#allocation3], %s19
      %s22 = sshll.u32 [#allocation2], 4
      %s23 = int_to_ptr.vmem [resolvable:$true] %s22
      %25 = dma.hbm_to_vmem [thread:$0]  %s0, 256, %s23, [#allocation3]
    $region5: #{tpu_custom_call.1} parent=1 // pred_fallthru
      _
    // Predicated region
    $region6: #{tpu_custom_call.1} parent=1 // pred_check
      _
    $region7: #{tpu_custom_call.1} parent=1 // pred_check_branch
      %27 = sbr.rel (0) target = $region9
    $region8: #{tpu_custom_call.1} parent=1 // pred_region
      %s29 = ssub.s32 3200, 3200
      %30 = vsyncadd [#allocation6], %s29
      %s31 = sshll.u32 [#allocation5], 4
      %s32 = int_to_ptr.vmem [resolvable:$true] %s31
      %37 = dma.hbm_to_vmem [thread:$0]  %s1, 3200, %s32, [#allocation6], 128, 128, 8
    $region9: #{tpu_custom_call.1} parent=1 // pred_fallthru
      _
    // Predicated region
    $region10: #{tpu_custom_call.1} parent=1 // pred_check
      _
    $region11: #{tpu_custom_call.1} parent=1 // pred_check_branch
      %39 = sbr.rel (0) target = $region13
    $region12: #{tpu_custom_call.1} parent=1 // pred_region
      _
    $region13: #{tpu_custom_call.1} parent=1 // pred_fallthru
      _
    // Predicated region
    $region14: #{tpu_custom_call.1} parent=1 // pred_check
      _
    $region15: #{tpu_custom_call.1} parent=1 // pred_check_branch
      %41 = sbr.rel (0) target = $region17
    $region16: #{tpu_custom_call.1} parent=1 // pred_region
      %s43 = ssub.s32 4096, 4096
      %44 = vsyncadd [#allocation6], %s43
      %s45 = sshll.u32 [#allocation7], 4
      %s46 = int_to_ptr.vmem [resolvable:$true] %s45
      %51 = dma.hbm_to_vmem [thread:$0]  %s3, 4096, %s46, [#allocation6], 128, 128, 8
    $region17: #{tpu_custom_call.1} parent=1 // pred_fallthru
      _
    // Predicated region
    $region18: #{tpu_custom_call.1} parent=1 // pred_check
      _
    $region19: #{tpu_custom_call.1} parent=1 // pred_check_branch
      %53 = sbr.rel (0) target = $region21
    $region20: #{tpu_custom_call.1} parent=1 // pred_region
      _
    $region21: #{tpu_custom_call.1} parent=1 // pred_fallthru
      _
    // Predicated region
    $region22: #{tpu_custom_call.1} parent=1 // pred_check
      _
    $region23: #{tpu_custom_call.1} parent=1 // pred_check_branch
      %55 = sbr.rel (0) target = $region25
    $region24: #{tpu_custom_call.1} parent=1 // pred_region
      %s57 = ssub.s32 4096, 4096
      %58 = vsyncadd [#allocation9], %s57
      %s59 = sshll.u32 [#allocation8], 4
      %s60 = int_to_ptr.vmem [resolvable:$true] %s59
      %65 = dma.hbm_to_vmem [thread:$0]  %s5, 4096, %s60, [#allocation9], 128, 128, 8
    $region25: #{tpu_custom_call.1} parent=1 // pred_fallthru
      _
    // Predicated region
    $region26: #{tpu_custom_call.1} parent=1 // pred_check
      _
    $region27: #{tpu_custom_call.1} parent=1 // pred_check_branch
      %67 = sbr.rel (0) target = $region29
    $region28: #{tpu_custom_call.1} parent=1 // pred_region
      _
    $region29: #{tpu_custom_call.1} parent=1 // pred_fallthru
      _
    // Predicated region
    $region30: #{tpu_custom_call.1} parent=1 // pred_check
      _
    $region31: #{tpu_custom_call.1} parent=1 // pred_check_branch
      %69 = sbr.rel (0) target = $region33
    $region32: #{tpu_custom_call.1} parent=1 // pred_region
      %70 = dma.done [#allocation3], 256
    $region33: #{tpu_custom_call.1} parent=1 // pred_fallthru
      _
    // Predicated region
    $region34: #{tpu_custom_call.1} parent=1 // pred_check
      _
    $region35: #{tpu_custom_call.1} parent=1 // pred_check_branch
      %72 = sbr.rel (0) target = $region37
    $region36: #{tpu_custom_call.1} parent=1 // pred_region
      %73 = dma.done [#allocation6], 3200
    $region37: #{tpu_custom_call.1} parent=1 // pred_fallthru
      _
    // Predicated region
    $region38: #{tpu_custom_call.1} parent=1 // pred_check
      _
    $region39: #{tpu_custom_call.1} parent=1 // pred_check_branch
      %75 = sbr.rel (0) target = $region41
    $region40: #{tpu_custom_call.1} parent=1 // pred_region
      %76 = dma.done [#allocation6], 4096
    $region41: #{tpu_custom_call.1} parent=1 // pred_fallthru
      _
    // Predicated region
    $region42: #{tpu_custom_call.1} parent=1 // pred_check
      _
    $region43: #{tpu_custom_call.1} parent=1 // pred_check_branch
      %78 = sbr.rel (0) target = $region45
    $region44: #{tpu_custom_call.1} parent=1 // pred_region
      %79 = dma.done [#allocation9], 4096
    $region45: #{tpu_custom_call.1} parent=1 // pred_fallthru
      _
    %v81 = vld [vmem:[#allocation2] sm:$0xff]
    %v82 = vld [vmem:[#allocation2 + $0x8] sm:$0xff]
    %v83 = vpack.c.bf16 %v81, %v81
    %v84 = vpack.c.bf16 %v82, %v82
    %v85 = vld [vmem:[#allocation5] sm:$0xff]
    %v86 = vld [vmem:[#allocation5 + $0x8] sm:$0xff]
    %v87 = vld [vmem:[#allocation5 + $0x10] sm:$0xff]
    %v88 = vld [vmem:[#allocation5 + $0x18] sm:$0xff]
    %v89 = vld [vmem:[#allocation5 + $0x20] sm:$0xff]
    %v90 = vld [vmem:[#allocation5 + $0x28] sm:$0xff]
    %v91 = vld [vmem:[#allocation5 + $0x30] sm:$0xff]
    %v92 = vld [vmem:[#allocation5 + $0x38] sm:$0xff]
    %v93 = vld [vmem:[#allocation5 + $0x40] sm:$0xff]
    %v94 = vld [vmem:[#allocation5 + $0x48] sm:$0xff]
    %v95 = vld [vmem:[#allocation5 + $0x50] sm:$0xff]
    %v96 = vld [vmem:[#allocation5 + $0x58] sm:$0xff]
    %v97 = vld [vmem:[#allocation5 + $0x60] sm:$0xff]
    %v98 = vld [vmem:[#allocation5 + $0x68] sm:$0xff]
    %v99 = vld [vmem:[#allocation5 + $0x70] sm:$0xff]
    %v100 = vld [vmem:[#allocation5 + $0x78] sm:$0xff]
    %v101 = vld [vmem:[#allocation5 + $0x80] sm:$0xff]
    %v102 = vld [vmem:[#allocation5 + $0x88] sm:$0xff]
    %v103 = vld [vmem:[#allocation5 + $0x90] sm:$0xff]
    %v104 = vld [vmem:[#allocation5 + $0x98] sm:$0xff]
    %v105 = vld [vmem:[#allocation5 + $0xa0] sm:$0xff]
    %v106 = vld [vmem:[#allocation5 + $0xa8] sm:$0xff]
    %v107 = vld [vmem:[#allocation5 + $0xb0] sm:$0xff]
    %v108 = vld [vmem:[#allocation5 + $0xb8] sm:$0xff]
    %v109 = vld [vmem:[#allocation5 + $0xc0] sm:$0xff]
    %v110 = vld [vmem:[%s2] sm:$0x3]
    %v112 = vlaneseq
    %v113 = vshrl.u32 %v112, 7
    %v114 = vsub.s32 0, %v113
    %v115 = vrot.slane %v110, %v114
    %v116 = vlaneseq
    %v117 = vshrl.u32 %v116, 7
    %v118 = vsub.s32 1, %v117
    %v119 = vrot.slane %v110, %v118
    %v147 = vunpack.c.l.b16 %v85
    %v148 = vunpack.c.h.b16 %v85
    %v149 = vunpack.c.l.b16 %v86
    %v150 = vunpack.c.h.b16 %v86
    %v151 = vunpack.c.l.b16 %v87
    %v152 = vunpack.c.h.b16 %v87
    %v153 = vunpack.c.l.b16 %v88
    %v154 = vunpack.c.h.b16 %v88
    %v155 = vunpack.c.l.b16 %v89
    %v156 = vunpack.c.h.b16 %v89
    %v157 = vunpack.c.l.b16 %v90
    %v158 = vunpack.c.h.b16 %v90
    %v159 = vunpack.c.l.b16 %v91
    %v160 = vunpack.c.h.b16 %v91
    %v161 = vunpack.c.l.b16 %v92
    %v162 = vunpack.c.h.b16 %v92
    %v163 = vunpack.c.l.b16 %v93
    %v164 = vunpack.c.h.b16 %v93
    %v165 = vunpack.c.l.b16 %v94
    %v166 = vunpack.c.h.b16 %v94
    %v167 = vunpack.c.l.b16 %v95
    %v168 = vunpack.c.h.b16 %v95
    %v169 = vunpack.c.l.b16 %v96
    %v170 = vunpack.c.h.b16 %v96
    %v171 = vunpack.c.l.b16 %v97
    %v172 = vunpack.c.h.b16 %v97
    %v173 = vunpack.c.l.b16 %v98
    %v174 = vunpack.c.h.b16 %v98
    %v175 = vunpack.c.l.b16 %v99
    %v176 = vunpack.c.h.b16 %v99
    %v177 = vunpack.c.l.b16 %v100
    %v178 = vunpack.c.h.b16 %v100
    %v179 = vunpack.c.l.b16 %v101
    %v180 = vunpack.c.h.b16 %v101
    %v181 = vunpack.c.l.b16 %v102
    %v182 = vunpack.c.h.b16 %v102
    %v183 = vunpack.c.l.b16 %v103
    %v184 = vunpack.c.h.b16 %v103
    %v185 = vunpack.c.l.b16 %v104
    %v186 = vunpack.c.h.b16 %v104
    %v187 = vunpack.c.l.b16 %v105
    %v188 = vunpack.c.h.b16 %v105
    %v189 = vunpack.c.l.b16 %v106
    %v190 = vunpack.c.h.b16 %v106
    %v191 = vunpack.c.l.b16 %v107
    %v192 = vunpack.c.h.b16 %v107
    %v193 = vunpack.c.l.b16 %v108
    %v194 = vunpack.c.h.b16 %v108
    %v195 = vunpack.c.l.b16 %v109
    %v196 = vunpack.c.h.b16 %v109
    %v197 = vpack.c.b16 %v149, %v147
    %v198 = vpack.c.b16 %v150, %v148
    %v199 = vpack.c.b16 %v153, %v151
    %v200 = vpack.c.b16 %v154, %v152
    %v201 = vpack.c.b16 %v157, %v155
    %v202 = vpack.c.b16 %v158, %v156
    %v203 = vpack.c.b16 %v161, %v159
    %v204 = vpack.c.b16 %v162, %v160
    %v205 = vpack.c.b16 %v165, %v163
    %v206 = vpack.c.b16 %v166, %v164
    %v207 = vpack.c.b16 %v169, %v167
    %v208 = vpack.c.b16 %v170, %v168
    %v209 = vpack.c.b16 %v173, %v171
    %v210 = vpack.c.b16 %v174, %v172
    %v211 = vpack.c.b16 %v177, %v175
    %v212 = vpack.c.b16 %v178, %v176
    %v213 = vpack.c.b16 %v181, %v179
    %v214 = vpack.c.b16 %v182, %v180
    %v215 = vpack.c.b16 %v185, %v183
    %v216 = vpack.c.b16 %v186, %v184
    %v217 = vpack.c.b16 %v189, %v187
    %v218 = vpack.c.b16 %v190, %v188
    %v219 = vpack.c.b16 %v193, %v191
    %v220 = vpack.c.b16 %v194, %v192
    %v221 = vpack.c.b16 %v195, %v195
    %v222 = vpack.c.b16 %v196, %v196
    %vm247 = vcmask 588800
    %v249 = vsel %vm247, %v84, 0
    %vm251 = vcmask 1043456
    %v253 = vsel %vm251, %v221, 0
    %v256 = vsel %vm251, %v222, 0
    %258 = vmatprep.subr.bf16.mxu0 %v198
    %259 = vmatpush1.bf16.msra.mxu0 %v197
    %260 = vmatprep.subr.bf16.mxu0 %v200
    %261 = vmatpush1.bf16.msra.mxu0 %v199
    %262 = vmatprep.subr.bf16.mxu0 %v202
    %263 = vmatpush1.bf16.msra.mxu0 %v201
    %264 = vmatprep.subr.bf16.mxu0 %v204
    %265 = vmatpush1.bf16.msra.mxu0 %v203
    %266 = vmatprep.subr.bf16.mxu0 %v206
    %267 = vmatpush1.bf16.msra.mxu0 %v205
    %268 = vmatprep.subr.bf16.mxu0 %v208
    %269 = vmatpush1.bf16.msra.mxu0 %v207
    %270 = vmatprep.subr.bf16.mxu0 %v210
    %271 = vmatpush1.bf16.msra.mxu0 %v209
    %272 = vmatprep.subr.bf16.mxu0 %v212
    %273 = vmatpush1.bf16.msra.mxu0 %v211
    %274 = vmatprep.subr.bf16.mxu0 %v214
    %275 = vmatpush1.bf16.msra.mxu0 %v213
    %276 = vmatprep.subr.bf16.mxu0 %v216
    %277 = vmatpush1.bf16.msra.mxu0 %v215
    %278 = vmatprep.subr.bf16.mxu0 %v218
    %279 = vmatpush1.bf16.msra.mxu0 %v217
    %280 = vmatprep.subr.bf16.mxu0 %v220
    %281 = vmatpush1.bf16.msra.mxu0 %v219
    %282 = vmatprep.subr.bf16.mxu0 %v256
    %283 = vmatpush1.bf16.msra.mxu0 %v253
    %284 = vmatprep.subr.bf16.mxu0 0
    %285 = vmatpush1.bf16.msra.mxu0 0
    %286 = vmatprep.subr.bf16.mxu0 0
    %287 = vmatpush1.bf16.msra.mxu0 0
    %288 = vmatprep.subr.bf16.mxu0 0
    %289 = vmatpush1.bf16.msra.mxu0 0
    %290 = vmatprep.mubr.bf16.mxu0 %v249
    %291 = vmatmul.mubr.bf16.gmra.mrb[0].mxu0 %v83
    %v292 = vpop.f32.mrb[0].mxu0
    %v293 = vadd.f32 %v115, %v292
    %v294 = vpop.f32.mrb[0].mxu0
    %v295 = vadd.f32 %v119, %v294
    %v296 = vpop.f32.mrb[0].mxu0
    %v297 = vpop.f32.mrb[0].mxu0
    %298 = vdwg.mxu0
    %v299 = vmax.f32 %v293, 0.0
    %v300 = vmax.f32 %v295, 0.0
    %v301 = vpack.c.bf16 %v299, %v299
    %v302 = vpack.c.bf16 %v300, %v300
    %v303 = vld [vmem:[#allocation7] sm:$0xff]
    %v304 = vld [vmem:[#allocation7 + $0x8] sm:$0xff]
    %v305 = vld [vmem:[#allocation7 + $0x10] sm:$0xff]
    %v306 = vld [vmem:[#allocation7 + $0x18] sm:$0xff]
    %v307 = vld [vmem:[#allocation7 + $0x20] sm:$0xff]
    %v308 = vld [vmem:[#allocation7 + $0x28] sm:$0xff]
    %v309 = vld [vmem:[#allocation7 + $0x30] sm:$0xff]
    %v310 = vld [vmem:[#allocation7 + $0x38] sm:$0xff]
    %v311 = vld [vmem:[#allocation7 + $0x40] sm:$0xff]
    %v312 = vld [vmem:[#allocation7 + $0x48] sm:$0xff]
    %v313 = vld [vmem:[#allocation7 + $0x50] sm:$0xff]
    %v314 = vld [vmem:[#allocation7 + $0x58] sm:$0xff]
    %v315 = vld [vmem:[#allocation7 + $0x60] sm:$0xff]
    %v316 = vld [vmem:[#allocation7 + $0x68] sm:$0xff]
    %v317 = vld [vmem:[#allocation7 + $0x70] sm:$0xff]
    %v318 = vld [vmem:[#allocation7 + $0x78] sm:$0xff]
    %v319 = vld [vmem:[#allocation7 + $0x80] sm:$0xff]
    %v320 = vld [vmem:[#allocation7 + $0x88] sm:$0xff]
    %v321 = vld [vmem:[#allocation7 + $0x90] sm:$0xff]
    %v322 = vld [vmem:[#allocation7 + $0x98] sm:$0xff]
    %v323 = vld [vmem:[#allocation7 + $0xa0] sm:$0xff]
    %v324 = vld [vmem:[#allocation7 + $0xa8] sm:$0xff]
    %v325 = vld [vmem:[#allocation7 + $0xb0] sm:$0xff]
    %v326 = vld [vmem:[#allocation7 + $0xb8] sm:$0xff]
    %v327 = vld [vmem:[#allocation7 + $0xc0] sm:$0xff]
    %v328 = vld [vmem:[#allocation7 + $0xc8] sm:$0xff]
    %v329 = vld [vmem:[#allocation7 + $0xd0] sm:$0xff]
    %v330 = vld [vmem:[#allocation7 + $0xd8] sm:$0xff]
    %v331 = vld [vmem:[#allocation7 + $0xe0] sm:$0xff]
    %v332 = vld [vmem:[#allocation7 + $0xe8] sm:$0xff]
    %v333 = vld [vmem:[#allocation7 + $0xf0] sm:$0xff]
    %v334 = vld [vmem:[#allocation7 + $0xf8] sm:$0xff]
    %v335 = vld [vmem:[%s4] sm:$0x3]
    %v337 = vlaneseq
    %v338 = vshrl.u32 %v337, 7
    %v339 = vsub.s32 0, %v338
    %v340 = vrot.slane %v335, %v339
    %v341 = vlaneseq
    %v342 = vshrl.u32 %v341, 7
    %v343 = vsub.s32 1, %v342
    %v344 = vrot.slane %v335, %v343
    %v379 = vunpack.c.l.b16 %v303
    %v380 = vunpack.c.h.b16 %v303
    %v381 = vunpack.c.l.b16 %v304
    %v382 = vunpack.c.h.b16 %v304
    %v383 = vunpack.c.l.b16 %v305
    %v384 = vunpack.c.h.b16 %v305
    %v385 = vunpack.c.l.b16 %v306
    %v386 = vunpack.c.h.b16 %v306
    %v387 = vunpack.c.l.b16 %v307
    %v388 = vunpack.c.h.b16 %v307
    %v389 = vunpack.c.l.b16 %v308
    %v390 = vunpack.c.h.b16 %v308
    %v391 = vunpack.c.l.b16 %v309
    %v392 = vunpack.c.h.b16 %v309
    %v393 = vunpack.c.l.b16 %v310
    %v394 = vunpack.c.h.b16 %v310
    %v395 = vunpack.c.l.b16 %v311
    %v396 = vunpack.c.h.b16 %v311
    %v397 = vunpack.c.l.b16 %v312
    %v398 = vunpack.c.h.b16 %v312
    %v399 = vunpack.c.l.b16 %v313
    %v400 = vunpack.c.h.b16 %v313
    %v401 = vunpack.c.l.b16 %v314
    %v402 = vunpack.c.h.b16 %v314
    %v403 = vunpack.c.l.b16 %v315
    %v404 = vunpack.c.h.b16 %v315
    %v405 = vunpack.c.l.b16 %v316
    %v406 = vunpack.c.h.b16 %v316
    %v407 = vunpack.c.l.b16 %v317
    %v408 = vunpack.c.h.b16 %v317
    %v409 = vunpack.c.l.b16 %v318
    %v410 = vunpack.c.h.b16 %v318
    %v411 = vunpack.c.l.b16 %v319
    %v412 = vunpack.c.h.b16 %v319
    %v413 = vunpack.c.l.b16 %v320
    %v414 = vunpack.c.h.b16 %v320
    %v415 = vunpack.c.l.b16 %v321
    %v416 = vunpack.c.h.b16 %v321
    %v417 = vunpack.c.l.b16 %v322
    %v418 = vunpack.c.h.b16 %v322
    %v419 = vunpack.c.l.b16 %v323
    %v420 = vunpack.c.h.b16 %v323
    %v421 = vunpack.c.l.b16 %v324
    %v422 = vunpack.c.h.b16 %v324
    %v423 = vunpack.c.l.b16 %v325
    %v424 = vunpack.c.h.b16 %v325
    %v425 = vunpack.c.l.b16 %v326
    %v426 = vunpack.c.h.b16 %v326
    %v427 = vunpack.c.l.b16 %v327
    %v428 = vunpack.c.h.b16 %v327
    %v429 = vunpack.c.l.b16 %v328
    %v430 = vunpack.c.h.b16 %v328
    %v431 = vunpack.c.l.b16 %v329
    %v432 = vunpack.c.h.b16 %v329
    %v433 = vunpack.c.l.b16 %v330
    %v434 = vunpack.c.h.b16 %v330
    %v435 = vunpack.c.l.b16 %v331
    %v436 = vunpack.c.h.b16 %v331
    %v437 = vunpack.c.l.b16 %v332
    %v438 = vunpack.c.h.b16 %v332
    %v439 = vunpack.c.l.b16 %v333
    %v440 = vunpack.c.h.b16 %v333
    %v441 = vunpack.c.l.b16 %v334
    %v442 = vunpack.c.h.b16 %v334
    %v443 = vpack.c.b16 %v381, %v379
    %v444 = vpack.c.b16 %v382, %v380
    %v445 = vpack.c.b16 %v385, %v383
    %v446 = vpack.c.b16 %v386, %v384
    %v447 = vpack.c.b16 %v389, %v387
    %v448 = vpack.c.b16 %v390, %v388
    %v449 = vpack.c.b16 %v393, %v391
    %v450 = vpack.c.b16 %v394, %v392
    %v451 = vpack.c.b16 %v397, %v395
    %v452 = vpack.c.b16 %v398, %v396
    %v453 = vpack.c.b16 %v401, %v399
    %v454 = vpack.c.b16 %v402, %v400
    %v455 = vpack.c.b16 %v405, %v403
    %v456 = vpack.c.b16 %v406, %v404
    %v457 = vpack.c.b16 %v409, %v407
    %v458 = vpack.c.b16 %v410, %v408
    %v459 = vpack.c.b16 %v413, %v411
    %v460 = vpack.c.b16 %v414, %v412
    %v461 = vpack.c.b16 %v417, %v415
    %v462 = vpack.c.b16 %v418, %v416
    %v463 = vpack.c.b16 %v421, %v419
    %v464 = vpack.c.b16 %v422, %v420
    %v465 = vpack.c.b16 %v425, %v423
    %v466 = vpack.c.b16 %v426, %v424
    %v467 = vpack.c.b16 %v429, %v427
    %v468 = vpack.c.b16 %v430, %v428
    %v469 = vpack.c.b16 %v433, %v431
    %v470 = vpack.c.b16 %v434, %v432
    %v471 = vpack.c.b16 %v437, %v435
    %v472 = vpack.c.b16 %v438, %v436
    %v473 = vpack.c.b16 %v441, %v439
    %v474 = vpack.c.b16 %v442, %v440
    %507 = vmatprep.subr.bf16.mxu0 %v444
    %508 = vmatpush1.bf16.msra.mxu0 %v443
    %509 = vmatprep.subr.bf16.mxu0 %v446
    %510 = vmatpush1.bf16.msra.mxu0 %v445
    %511 = vmatprep.subr.bf16.mxu0 %v448
    %512 = vmatpush1.bf16.msra.mxu0 %v447
    %513 = vmatprep.subr.bf16.mxu0 %v450
    %514 = vmatpush1.bf16.msra.mxu0 %v449
    %515 = vmatprep.subr.bf16.mxu0 %v452
    %516 = vmatpush1.bf16.msra.mxu0 %v451
    %517 = vmatprep.subr.bf16.mxu0 %v454
    %518 = vmatpush1.bf16.msra.mxu0 %v453
    %519 = vmatprep.subr.bf16.mxu0 %v456
    %520 = vmatpush1.bf16.msra.mxu0 %v455
    %521 = vmatprep.subr.bf16.mxu0 %v458
    %522 = vmatpush1.bf16.msra.mxu0 %v457
    %523 = vmatprep.subr.bf16.mxu0 %v460
    %524 = vmatpush1.bf16.msra.mxu0 %v459
    %525 = vmatprep.subr.bf16.mxu0 %v462
    %526 = vmatpush1.bf16.msra.mxu0 %v461
    %527 = vmatprep.subr.bf16.mxu0 %v464
    %528 = vmatpush1.bf16.msra.mxu0 %v463
    %529 = vmatprep.subr.bf16.mxu0 %v466
    %530 = vmatpush1.bf16.msra.mxu0 %v465
    %531 = vmatprep.subr.bf16.mxu0 %v468
    %532 = vmatpush1.bf16.msra.mxu0 %v467
    %533 = vmatprep.subr.bf16.mxu0 %v470
    %534 = vmatpush1.bf16.msra.mxu0 %v469
    %535 = vmatprep.subr.bf16.mxu0 %v472
    %536 = vmatpush1.bf16.msra.mxu0 %v471
    %537 = vmatprep.subr.bf16.mxu0 %v474
    %538 = vmatpush1.bf16.msra.mxu0 %v473
    %539 = vmatprep.mubr.bf16.mxu0 %v302
    %540 = vmatmul.mubr.bf16.gmra.mrb[0].mxu0 %v301
    %v541 = vpop.f32.mrb[0].mxu0
    %v542 = vadd.f32 %v340, %v541
    %v543 = vpop.f32.mrb[0].mxu0
    %v544 = vadd.f32 %v344, %v543
    %v545 = vpop.f32.mrb[0].mxu0
    %v546 = vpop.f32.mrb[0].mxu0
    %547 = vdwg.mxu0
    %v548 = vmax.f32 %v542, 0.0
    %v549 = vmax.f32 %v544, 0.0
    %v550 = vpack.c.bf16 %v548, %v548
    %v551 = vpack.c.bf16 %v549, %v549
    %v552 = vld [vmem:[#allocation8] sm:$0xff]
    %v553 = vld [vmem:[#allocation8 + $0x8] sm:$0xff]
    %v554 = vld [vmem:[#allocation8 + $0x10] sm:$0xff]
    %v555 = vld [vmem:[#allocation8 + $0x18] sm:$0xff]
    %v556 = vld [vmem:[#allocation8 + $0x20] sm:$0xff]
    %v557 = vld [vmem:[#allocation8 + $0x28] sm:$0xff]
    %v558 = vld [vmem:[#allocation8 + $0x30] sm:$0xff]
    %v559 = vld [vmem:[#allocation8 + $0x38] sm:$0xff]
    %v560 = vld [vmem:[#allocation8 + $0x40] sm:$0xff]
    %v561 = vld [vmem:[#allocation8 + $0x48] sm:$0xff]
    %v562 = vld [vmem:[#allocation8 + $0x50] sm:$0xff]
    %v563 = vld [vmem:[#allocation8 + $0x58] sm:$0xff]
    %v564 = vld [vmem:[#allocation8 + $0x60] sm:$0xff]
    %v565 = vld [vmem:[#allocation8 + $0x68] sm:$0xff]
    %v566 = vld [vmem:[#allocation8 + $0x70] sm:$0xff]
    %v567 = vld [vmem:[#allocation8 + $0x78] sm:$0xff]
    %v568 = vld [vmem:[#allocation8 + $0x80] sm:$0xff]
    %v569 = vld [vmem:[#allocation8 + $0x88] sm:$0xff]
    %v570 = vld [vmem:[#allocation8 + $0x90] sm:$0xff]
    %v571 = vld [vmem:[#allocation8 + $0x98] sm:$0xff]
    %v572 = vld [vmem:[#allocation8 + $0xa0] sm:$0xff]
    %v573 = vld [vmem:[#allocation8 + $0xa8] sm:$0xff]
    %v574 = vld [vmem:[#allocation8 + $0xb0] sm:$0xff]
    %v575 = vld [vmem:[#allocation8 + $0xb8] sm:$0xff]
    %v576 = vld [vmem:[#allocation8 + $0xc0] sm:$0xff]
    %v577 = vld [vmem:[#allocation8 + $0xc8] sm:$0xff]
    %v578 = vld [vmem:[#allocation8 + $0xd0] sm:$0xff]
    %v579 = vld [vmem:[#allocation8 + $0xd8] sm:$0xff]
    %v580 = vld [vmem:[#allocation8 + $0xe0] sm:$0xff]
    %v581 = vld [vmem:[#allocation8 + $0xe8] sm:$0xff]
    %v582 = vld [vmem:[#allocation8 + $0xf0] sm:$0xff]
    %v583 = vld [vmem:[#allocation8 + $0xf8] sm:$0xff]
    %v584 = vld [vmem:[%s6] sm:$0x3]
    %v586 = vlaneseq
    %v587 = vshrl.u32 %v586, 7
    %v588 = vsub.s32 0, %v587
    %v589 = vrot.slane %v584, %v588
    %v590 = vlaneseq
    %v591 = vshrl.u32 %v590, 7
    %v592 = vsub.s32 1, %v591
    %v593 = vrot.slane %v584, %v592
    %v628 = vunpack.c.l.b16 %v552
    %v629 = vunpack.c.h.b16 %v552
    %v630 = vunpack.c.l.b16 %v553
    %v631 = vunpack.c.h.b16 %v553
    %v632 = vunpack.c.l.b16 %v554
    %v633 = vunpack.c.h.b16 %v554
    %v634 = vunpack.c.l.b16 %v555
    %v635 = vunpack.c.h.b16 %v555
    %v636 = vunpack.c.l.b16 %v556
    %v637 = vunpack.c.h.b16 %v556
    %v638 = vunpack.c.l.b16 %v557
    %v639 = vunpack.c.h.b16 %v557
    %v640 = vunpack.c.l.b16 %v558
    %v641 = vunpack.c.h.b16 %v558
    %v642 = vunpack.c.l.b16 %v559
    %v643 = vunpack.c.h.b16 %v559
    %v644 = vunpack.c.l.b16 %v560
    %v645 = vunpack.c.h.b16 %v560
    %v646 = vunpack.c.l.b16 %v561
    %v647 = vunpack.c.h.b16 %v561
    %v648 = vunpack.c.l.b16 %v562
    %v649 = vunpack.c.h.b16 %v562
    %v650 = vunpack.c.l.b16 %v563
    %v651 = vunpack.c.h.b16 %v563
    %v652 = vunpack.c.l.b16 %v564
    %v653 = vunpack.c.h.b16 %v564
    %v654 = vunpack.c.l.b16 %v565
    %v655 = vunpack.c.h.b16 %v565
    %v656 = vunpack.c.l.b16 %v566
    %v657 = vunpack.c.h.b16 %v566
    %v658 = vunpack.c.l.b16 %v567
    %v659 = vunpack.c.h.b16 %v567
    %v660 = vunpack.c.l.b16 %v568
    %v661 = vunpack.c.h.b16 %v568
    %v662 = vunpack.c.l.b16 %v569
    %v663 = vunpack.c.h.b16 %v569
    %v664 = vunpack.c.l.b16 %v570
    %v665 = vunpack.c.h.b16 %v570
    %v666 = vunpack.c.l.b16 %v571
    %v667 = vunpack.c.h.b16 %v571
    %v668 = vunpack.c.l.b16 %v572
    %v669 = vunpack.c.h.b16 %v572
    %v670 = vunpack.c.l.b16 %v573
    %v671 = vunpack.c.h.b16 %v573
    %v672 = vunpack.c.l.b16 %v574
    %v673 = vunpack.c.h.b16 %v574
    %v674 = vunpack.c.l.b16 %v575
    %v675 = vunpack.c.h.b16 %v575
    %v676 = vunpack.c.l.b16 %v576
    %v677 = vunpack.c.h.b16 %v576
    %v678 = vunpack.c.l.b16 %v577
    %v679 = vunpack.c.h.b16 %v577
    %v680 = vunpack.c.l.b16 %v578
    %v681 = vunpack.c.h.b16 %v578
    %v682 = vunpack.c.l.b16 %v579
    %v683 = vunpack.c.h.b16 %v579
    %v684 = vunpack.c.l.b16 %v580
    %v685 = vunpack.c.h.b16 %v580
    %v686 = vunpack.c.l.b16 %v581
    %v687 = vunpack.c.h.b16 %v581
    %v688 = vunpack.c.l.b16 %v582
    %v689 = vunpack.c.h.b16 %v582
    %v690 = vunpack.c.l.b16 %v583
    %v691 = vunpack.c.h.b16 %v583
    %v692 = vpack.c.b16 %v630, %v628
    %v693 = vpack.c.b16 %v631, %v629
    %v694 = vpack.c.b16 %v634, %v632
    %v695 = vpack.c.b16 %v635, %v633
    %v696 = vpack.c.b16 %v638, %v636
    %v697 = vpack.c.b16 %v639, %v637
    %v698 = vpack.c.b16 %v642, %v640
    %v699 = vpack.c.b16 %v643, %v641
    %v700 = vpack.c.b16 %v646, %v644
    %v701 = vpack.c.b16 %v647, %v645
    %v702 = vpack.c.b16 %v650, %v648
    %v703 = vpack.c.b16 %v651, %v649
    %v704 = vpack.c.b16 %v654, %v652
    %v705 = vpack.c.b16 %v655, %v653
    %v706 = vpack.c.b16 %v658, %v656
    %v707 = vpack.c.b16 %v659, %v657
    %v708 = vpack.c.b16 %v662, %v660
    %v709 = vpack.c.b16 %v663, %v661
    %v710 = vpack.c.b16 %v666, %v664
    %v711 = vpack.c.b16 %v667, %v665
    %v712 = vpack.c.b16 %v670, %v668
    %v713 = vpack.c.b16 %v671, %v669
    %v714 = vpack.c.b16 %v674, %v672
    %v715 = vpack.c.b16 %v675, %v673
    %v716 = vpack.c.b16 %v678, %v676
    %v717 = vpack.c.b16 %v679, %v677
    %v718 = vpack.c.b16 %v682, %v680
    %v719 = vpack.c.b16 %v683, %v681
    %v720 = vpack.c.b16 %v686, %v684
    %v721 = vpack.c.b16 %v687, %v685
    %v722 = vpack.c.b16 %v690, %v688
    %v723 = vpack.c.b16 %v691, %v689
    %756 = vmatprep.subr.bf16.mxu0 %v693
    %757 = vmatpush1.bf16.msra.mxu0 %v692
    %758 = vmatprep.subr.bf16.mxu0 %v695
    %759 = vmatpush1.bf16.msra.mxu0 %v694
    %760 = vmatprep.subr.bf16.mxu0 %v697
    %761 = vmatpush1.bf16.msra.mxu0 %v696
    %762 = vmatprep.subr.bf16.mxu0 %v699
    %763 = vmatpush1.bf16.msra.mxu0 %v698
    %764 = vmatprep.subr.bf16.mxu0 %v701
    %765 = vmatpush1.bf16.msra.mxu0 %v700
    %766 = vmatprep.subr.bf16.mxu0 %v703
    %767 = vmatpush1.bf16.msra.mxu0 %v702
    %768 = vmatprep.subr.bf16.mxu0 %v705
    %769 = vmatpush1.bf16.msra.mxu0 %v704
    %770 = vmatprep.subr.bf16.mxu0 %v707
    %771 = vmatpush1.bf16.msra.mxu0 %v706
    %772 = vmatprep.subr.bf16.mxu0 %v709
    %773 = vmatpush1.bf16.msra.mxu0 %v708
    %774 = vmatprep.subr.bf16.mxu0 %v711
    %775 = vmatpush1.bf16.msra.mxu0 %v710
    %776 = vmatprep.subr.bf16.mxu0 %v713
    %777 = vmatpush1.bf16.msra.mxu0 %v712
    %778 = vmatprep.subr.bf16.mxu0 %v715
    %779 = vmatpush1.bf16.msra.mxu0 %v714
    %780 = vmatprep.subr.bf16.mxu0 %v717
    %781 = vmatpush1.bf16.msra.mxu0 %v716
    %782 = vmatprep.subr.bf16.mxu0 %v719
    %783 = vmatpush1.bf16.msra.mxu0 %v718
    %784 = vmatprep.subr.bf16.mxu0 %v721
    %785 = vmatpush1.bf16.msra.mxu0 %v720
    %786 = vmatprep.subr.bf16.mxu0 %v723
    %787 = vmatpush1.bf16.msra.mxu0 %v722
    %788 = vmatprep.mubr.bf16.mxu0 %v551
    %789 = vmatmul.mubr.bf16.gmra.mrb[0].mxu0 %v550
    %v790 = vpop.f32.mrb[0].mxu0
    %v791 = vadd.f32 %v589, %v790
    %v792 = vpop.f32.mrb[0].mxu0
    %v793 = vadd.f32 %v593, %v792
    %v794 = vpop.f32.mrb[0].mxu0
    %v795 = vpop.f32.mrb[0].mxu0
    %796 = vdwg.mxu0
    %v797 = vpack.c.bf16 %v791, %v791
    %v798 = vpack.c.bf16 %v793, %v793
    %v801 = vunpack.c.l.b16 %v797
    %v802 = vunpack.c.l.b16 %v798
    %v803 = vpack.c.b16 %v802, %v801
    %805 = vst [vmem:[#allocation10] sm:$0xff] %v803
    // Predicated region
    $region46: #{tpu_custom_call.1} parent=1 // pred_check
      _
    $region47: #{tpu_custom_call.1} parent=1 // pred_check_branch
      %807 = sbr.rel (0) target = $region49
    $region48: #{tpu_custom_call.1} parent=1 // pred_region
      %s809 = ssub.s32 128, 128
      %810 = vsyncadd [#allocation4], %s809
      %s812 = sshll.u32 [#allocation10], 4
      %s813 = int_to_ptr.vmem [resolvable:$true] %s812
      %815 = dma.vmem_to_hbm [thread:$0]  %s813, 128, %s7, [#allocation4]
    $region49: #{tpu_custom_call.1} parent=1 // pred_fallthru
      _
    // Predicated region
    $region50: #{tpu_custom_call.1} parent=1 // pred_check
      _
    $region51: #{tpu_custom_call.1} parent=1 // pred_check_branch
      %817 = sbr.rel (0) target = $region53
    $region52: #{tpu_custom_call.1} parent=1 // pred_region
      %818 = dma.done [#allocation4], 128
    $region53: #{tpu_custom_call.1} parent=1 // pred_fallthru
      _
    %819 = vsyncpa [#allocation3], 1
    %820 = vsyncpa [#allocation6], 1
    %821 = vsyncpa [#allocation9], 1
    %822 = vsyncpa [#allocation4], 1

</llo_original>
